<compile_context>
chip_gen: v7x
topology: tpu7x:2x2x1
jax: 0.10.0
libtpu: 0.0.40
codegen_flags: <defaults>
</compile_context>

<pallas_src>
import jax
import jax.numpy as jnp
from jax.experimental import pallas as pl
from jax.experimental.pallas import tpu as pltpu


def region_embedding_kernel(x_ref, w_ref, b_ref, o_ref):
    """Fused (conv k=K ∘ 1x1 conv) for one batch tile.

    x_ref: (Bt, L+K-1, E) bf16  pre-padded embedded tokens (channel-last)
    w_ref: (K*E, Opad)    bf16  fused weight, tap-major: row k*E+i
    b_ref: (1, Opad)      f32   fused bias
    o_ref: (Bt, Opad, L)  f32   output, already in (B, out_dim, L) layout
    """
    Bt, Opad, L = o_ref.shape
    E = x_ref.shape[2]
    K = w_ref.shape[0] // E

    def tap(k):
        # static window offset -> cheap sublane-shifted load, no im2col copy
        lhs = x_ref[:, pl.ds(k, L), :].reshape(Bt * L, E)       # (Bt*L, E)
        w_k = w_ref[pl.ds(k * E, E), :]                         # (E, Opad)
        return jnp.dot(lhs, w_k, preferred_element_type=jnp.float32)

    acc = tap(0)
    for k in range(1, K):                 # static unroll: K small MXU matmuls
        acc = acc + tap(k)
    acc = acc + b_ref[...]                                      # (1, Opad) bcast

    # (Bt*L, Opad) -> (Bt, L, Opad) -> (Bt, Opad, L); XLU transpose (idle slot)
    out = jnp.transpose(acc.reshape(Bt, L, Opad), (0, 2, 1))
    o_ref[...] = out.astype(o_ref.dtype)


def _tpu_config():
    """Best-effort per-generation VMEM sizing and TensorCore count."""
    vmem_cap = 128 * 1024 * 1024
    num_cores = 1
    try:
        info = pltpu.get_tpu_info()
        vmem_cap = int(getattr(info, "vmem_capacity_bytes", vmem_cap))
    except Exception:
        pass
    try:
        if "v7" in jax.devices()[0].device_kind.lower():
            num_cores = 2                       # v7x: 2 TensorCores per chip
    except Exception:
        pass
    if vmem_cap <= 64 * 1024 * 1024:            # v7x-class: 64 MiB per TC
        vmem_limit = 36 * 1024 * 1024
        tile_budget = 24 * 1024 * 1024
    else:                                       # v5e / v6e: 128 MiB
        vmem_limit = 64 * 1024 * 1024
        tile_budget = 44 * 1024 * 1024
    return vmem_limit, tile_budget, num_cores


def _pick_batch_tile(B, L, Lp, E, Opad, K, vmem_budget_bytes, num_cores):
    """Batch tile: >=4096 matmul rows/step, VMEM-bounded, TC-count aware."""

    def step_bytes(t):
        return (2 * t * Lp * E * 2            # double-buffered bf16 input blocks
                + 2 * t * Opad * L * 4        # double-buffered f32 output blocks
                + 2 * t * L * Opad * 4        # f32 accumulator + transpose temp
                + K * t * L * E * 2           # per-tap window loads (worst case)
                + K * E * Opad * 2 + Opad * 4)  # fused weights (bf16) + bias

    target_rows = 4096                        # amortize ~0.35 us/step overhead
    bt = max(1, min(B, pl.cdiv(target_rows, max(L, 1))))
    if num_cores >= 2 and B >= 2 * num_cores:
        # only split for parallelism when there really are multiple TCs (v7x)
        bt = min(bt, pl.cdiv(B, num_cores))
    while bt > 1 and step_bytes(bt) > vmem_budget_bytes:
        bt -= 1
    return bt


def region_embedding_forward(token_ids, params, kernel_sizes=(5, 9)):
    """Reproduces RegionEmbedding.forward. Returns (B, out_dim, L) float32."""
    # TODO(synk): the nn.Embedding gather stays as an XLA gather; fusing it
    # in-kernel (PrefetchScalarGridSpec + pl.Element row gather) only pays off
    # at production B*L*E sizes.
    emb = params["embed"][token_ids]                 # (B, L, E) f32

    # forward quirk: zip(region_embeds, linears[1:]) -> one iteration with
    # conv = region_embeds[0] (ksz=kernel_sizes[0]) and fc = linears[1].
    ksz = kernel_sizes[0]
    assert ksz % 2 == 1, "odd conv kernel expected (DPCNN uses 5/9)"
    conv_w = params["conv_w"][0]                     # (E, E, K)  torch OIH
    conv_b = params["conv_b"][0]                     # (E,)
    fc_w = params["fc_w"][1]                         # (O, E, 1)  torch OIH
    fc_b = params["fc_b"][1]                         # (O,)

    B, L, E = emb.shape
    O = fc_w.shape[0]
    K = conv_w.shape[2]
    assert K == ksz
    pad = K // 2

    # Fold the two linear layers in f32 (exact), then cast to bf16 for the MXU:
    #   W_fused[k*E+i, o] = sum_e conv_w[e, i, k] * fc_w[o, e, 0]
    #   b_fused[o]        = sum_e conv_b[e] * fc_w[o, e, 0] + fc_b[o]
    w0 = jnp.transpose(conv_w, (2, 1, 0))            # (K, E_in, E_conv)
    w1 = jnp.transpose(fc_w[:, :, 0], (1, 0))        # (E_conv, O)
    w_fused = jnp.einsum("kie,eo->kio", w0, w1).reshape(K * E, O)
    b_fused = (conv_b @ w1 + fc_b).reshape(1, O)

    # pad output channels to a lane-dense multiple of 128 (unmasked stores)
    Opad = max(128, pl.cdiv(O, 128) * 128)
    if Opad != O:
        w_fused = jnp.pad(w_fused, ((0, 0), (0, Opad - O)))
        b_fused = jnp.pad(b_fused, ((0, 0), (0, Opad - O)))
    w_bf = w_fused.astype(jnp.bfloat16)
    b_f32 = b_fused.astype(jnp.float32)

    # pre-pad the sequence ONCE in HBM; kernel windows over it with static pl.ds
    Lp = L + K - 1
    x = jnp.pad(emb, ((0, 0), (pad, pad), (0, 0))).astype(jnp.bfloat16)

    vmem_limit, tile_budget, num_cores = _tpu_config()
    Bt = _pick_batch_tile(B, L, Lp, E, Opad, K, tile_budget, num_cores)
    Bpad = pl.cdiv(B, Bt) * Bt
    if Bpad != B:
        x = jnp.pad(x, ((0, Bpad - B), (0, 0), (0, 0)))

    out = pl.pallas_call(
        region_embedding_kernel,
        out_shape=jax.ShapeDtypeStruct((Bpad, Opad, L), jnp.float32),
        grid=(Bpad // Bt,),
        in_specs=[
            pl.BlockSpec((Bt, Lp, E), lambda b: (b, 0, 0)),
            pl.BlockSpec((K * E, Opad), lambda b: (0, 0)),
            pl.BlockSpec((1, Opad), lambda b: (0, 0)),
        ],
        out_specs=pl.BlockSpec((Bt, Opad, L), lambda b: (b, 0, 0)),
        compiler_params=pltpu.CompilerParams(
            dimension_semantics=("parallel",),
            vmem_limit_bytes=vmem_limit),
    )(x, w_bf, b_f32)

    # padded batch rows / padded channels are sliced off (identity when aligned)
    return out[:B, :O, :]


def init_params(key, vocab, embed_dim, out_dim, kernel_sizes):
    """Deterministic synthetic parameters matching the module's __init__ shapes."""
    keys = jax.random.split(key, 2 + 4 * len(kernel_sizes))
    params = {"embed": jax.random.normal(keys[0], (vocab, embed_dim), jnp.float32) * 0.1}
    conv_w, conv_b, fc_w, fc_b = [], [], [], []
    i = 1
    for ksz in kernel_sizes:
        conv_w.append(jax.random.normal(keys[i], (embed_dim, embed_dim, ksz),
                                        jnp.float32) * 0.05); i += 1
        conv_b.append(jax.random.normal(keys[i], (embed_dim,), jnp.float32) * 0.05); i += 1
        fc_w.append(jax.random.normal(keys[i], (out_dim, embed_dim, 1),
                                      jnp.float32) * 0.05); i += 1
        fc_b.append(jax.random.normal(keys[i], (out_dim,), jnp.float32) * 0.05); i += 1
    params["conv_w"] = conv_w
    params["conv_b"] = conv_b
    params["fc_w"] = fc_w
    params["fc_b"] = fc_b
    return params


def reference_forward(token_ids, params, kernel_sizes=(5, 9)):
    """Pure-JAX f32 reference mirroring the PyTorch forward exactly."""
    emb = params["embed"][token_ids]                 # (B, L, E)
    x = jnp.transpose(emb, (0, 2, 1))                # (B, E, L)  (NCL)
    ksz = kernel_sizes[0]
    y = jax.lax.conv_general_dilated(
        x, params["conv_w"][0], window_strides=(1,), padding=[(ksz // 2, ksz // 2)],
        dimension_numbers=("NCH", "OIH", "NCH")) + params["conv_b"][0][None, :, None]
    out = jax.lax.conv_general_dilated(
        y, params["fc_w"][1], window_strides=(1,), padding=[(0, 0)],
        dimension_numbers=("NCH", "OIH", "NCH")) + params["fc_b"][1][None, :, None]
    return out


if __name__ == "__main__":
    B, L = 4, 16         # batch, seq
    VOCAB = 50
    EMBED_DIM = 32
    OUT_DIM = 128        # multiple of 128 -> Opad == O (no slice copy)
    KERNEL_SIZES = (5, 9)

    key = jax.random.PRNGKey(0)
    k_ids, k_params = jax.random.split(key)
    token_ids = jax.random.randint(k_ids, (B, L), 0, VOCAB)
    params = init_params(k_params, VOCAB, EMBED_DIM, OUT_DIM, KERNEL_SIZES)

    out = region_embedding_forward(token_ids, params, KERNEL_SIZES)
    out = jax.block_until_ready(out)

    ref = reference_forward(token_ids, params, KERNEL_SIZES)
    assert out.shape == (B, OUT_DIM, L), out.shape
    # bf16 operands vs f32 reference -> looser tolerance (f32 accumulation keeps
    # the error well inside this bound).
    assert jnp.allclose(out, ref, atol=1e-2, rtol=5e-2), \
        float(jnp.max(jnp.abs(out - ref)))

    print("KERNEL_OK")
</pallas_src>

<mosaic_0001>
module attributes {stable_mosaic.version = 11 : i64} {
  func.func @region_embedding_kernel(%arg0: i32, %arg1: memref<4x20x32xbf16, #tpu.memory_space<vmem>>, %arg2: memref<160x128xbf16, #tpu.memory_space<vmem>>, %arg3: memref<1x128xf32, #tpu.memory_space<vmem>>, %arg4: memref<4x128x16xf32, #tpu.memory_space<vmem>>) attributes {dimension_semantics = [#tpu.dimension_semantics<parallel>], iteration_bounds = array<i64: 1>, scalar_prefetch = 0 : i64, scratch_operands = 0 : i64, tpu.core_type = #tpu.core_type<tc>, window_params = [{transform_indices = @transform_0, window_bounds = array<i64: 4, 20, 32>}, {pipeline_mode = #tpu.pipeline_mode<synchronous>, transform_indices = @transform_1, window_bounds = array<i64: 160, 128>}, {pipeline_mode = #tpu.pipeline_mode<synchronous>, transform_indices = @transform_2, window_bounds = array<i64: 1, 128>}, {transform_indices = @transform_3, window_bounds = array<i64: 4, 128, 16>}]} {
    %c0 = arith.constant 0 : index
    %c0_0 = arith.constant 0 : index
    %c0_1 = arith.constant 0 : index
    %0 = vector.load %arg1[%c0, %c0_0, %c0_1] : memref<4x20x32xbf16, #tpu.memory_space<vmem>>, vector<4x16x32xbf16>
    %1 = vector.shape_cast %0 : vector<4x16x32xbf16> to vector<64x32xbf16>
    %c0_2 = arith.constant 0 : index
    %c0_3 = arith.constant 0 : index
    %2 = vector.load %arg2[%c0_2, %c0_3] : memref<160x128xbf16, #tpu.memory_space<vmem>>, vector<32x128xbf16>
    %cst = arith.constant dense<0.000000e+00> : vector<64x128xf32>
    %3 = tpu.matmul %1, %2, %cst {dimension_numbers = #tpu.dot_dimension_numbers<[1], [0], [0], [1], [0, 0, 1, 1], [], []>} : vector<64x32xbf16>, vector<32x128xbf16>, vector<64x128xf32> -> vector<64x128xf32>
    %c0_4 = arith.constant 0 : index
    %c1 = arith.constant 1 : index
    %c0_5 = arith.constant 0 : index
    %4 = vector.load %arg1[%c0_4, %c1, %c0_5] : memref<4x20x32xbf16, #tpu.memory_space<vmem>>, vector<4x16x32xbf16>
    %5 = vector.shape_cast %4 : vector<4x16x32xbf16> to vector<64x32xbf16>
    %c32 = arith.constant 32 : index
    %c0_6 = arith.constant 0 : index
    %6 = vector.load %arg2[%c32, %c0_6] : memref<160x128xbf16, #tpu.memory_space<vmem>>, vector<32x128xbf16>
    %cst_7 = arith.constant dense<0.000000e+00> : vector<64x128xf32>
    %7 = tpu.matmul %5, %6, %cst_7 {dimension_numbers = #tpu.dot_dimension_numbers<[1], [0], [0], [1], [0, 0, 1, 1], [], []>} : vector<64x32xbf16>, vector<32x128xbf16>, vector<64x128xf32> -> vector<64x128xf32>
    %8 = arith.addf %3, %7 : vector<64x128xf32>
    %c0_8 = arith.constant 0 : index
    %c2 = arith.constant 2 : index
    %c0_9 = arith.constant 0 : index
    %9 = vector.load %arg1[%c0_8, %c2, %c0_9] : memref<4x20x32xbf16, #tpu.memory_space<vmem>>, vector<4x16x32xbf16>
    %10 = vector.shape_cast %9 : vector<4x16x32xbf16> to vector<64x32xbf16>
    %c64 = arith.constant 64 : index
    %c0_10 = arith.constant 0 : index
    %11 = vector.load %arg2[%c64, %c0_10] : memref<160x128xbf16, #tpu.memory_space<vmem>>, vector<32x128xbf16>
    %cst_11 = arith.constant dense<0.000000e+00> : vector<64x128xf32>
    %12 = tpu.matmul %10, %11, %cst_11 {dimension_numbers = #tpu.dot_dimension_numbers<[1], [0], [0], [1], [0, 0, 1, 1], [], []>} : vector<64x32xbf16>, vector<32x128xbf16>, vector<64x128xf32> -> vector<64x128xf32>
    %13 = arith.addf %8, %12 : vector<64x128xf32>
    %c0_12 = arith.constant 0 : index
    %c3 = arith.constant 3 : index
    %c0_13 = arith.constant 0 : index
    %14 = vector.load %arg1[%c0_12, %c3, %c0_13] : memref<4x20x32xbf16, #tpu.memory_space<vmem>>, vector<4x16x32xbf16>
    %15 = vector.shape_cast %14 : vector<4x16x32xbf16> to vector<64x32xbf16>
    %c96 = arith.constant 96 : index
    %c0_14 = arith.constant 0 : index
    %16 = vector.load %arg2[%c96, %c0_14] : memref<160x128xbf16, #tpu.memory_space<vmem>>, vector<32x128xbf16>
    %cst_15 = arith.constant dense<0.000000e+00> : vector<64x128xf32>
    %17 = tpu.matmul %15, %16, %cst_15 {dimension_numbers = #tpu.dot_dimension_numbers<[1], [0], [0], [1], [0, 0, 1, 1], [], []>} : vector<64x32xbf16>, vector<32x128xbf16>, vector<64x128xf32> -> vector<64x128xf32>
    %18 = arith.addf %13, %17 : vector<64x128xf32>
    %c0_16 = arith.constant 0 : index
    %c4 = arith.constant 4 : index
    %c0_17 = arith.constant 0 : index
    %19 = vector.load %arg1[%c0_16, %c4, %c0_17] : memref<4x20x32xbf16, #tpu.memory_space<vmem>>, vector<4x16x32xbf16>
    %20 = vector.shape_cast %19 : vector<4x16x32xbf16> to vector<64x32xbf16>
    %c128 = arith.constant 128 : index
    %c0_18 = arith.constant 0 : index
    %21 = vector.load %arg2[%c128, %c0_18] : memref<160x128xbf16, #tpu.memory_space<vmem>>, vector<32x128xbf16>
    %cst_19 = arith.constant dense<0.000000e+00> : vector<64x128xf32>
    %22 = tpu.matmul %20, %21, %cst_19 {dimension_numbers = #tpu.dot_dimension_numbers<[1], [0], [0], [1], [0, 0, 1, 1], [], []>} : vector<64x32xbf16>, vector<32x128xbf16>, vector<64x128xf32> -> vector<64x128xf32>
    %23 = arith.addf %18, %22 : vector<64x128xf32>
    %c0_20 = arith.constant 0 : index
    %c0_21 = arith.constant 0 : index
    %24 = vector.load %arg3[%c0_20, %c0_21] : memref<1x128xf32, #tpu.memory_space<vmem>>, vector<1x128xf32>
    %25 = vector.broadcast %24 : vector<1x128xf32> to vector<64x128xf32>
    %26 = arith.addf %23, %25 : vector<64x128xf32>
    %27 = vector.shape_cast %26 : vector<64x128xf32> to vector<4x16x128xf32>
    %28 = tpu.transpose %27, [0, 2, 1] : vector<4x16x128xf32> -> vector<4x128x16xf32>
    %c0_22 = arith.constant 0 : index
    %c0_23 = arith.constant 0 : index
    %c0_24 = arith.constant 0 : index
    %29 = vector.load %arg4[%c0_22, %c0_23, %c0_24] : memref<4x128x16xf32, #tpu.memory_space<vmem>>, vector<4x128x16xf32>
    tpu.vector_store %arg4[%c0_22, %c0_23, %c0_24], %28 {strides = array<i32>} : memref<4x128x16xf32, #tpu.memory_space<vmem>>, vector<4x128x16xf32>,
    return
  }
  func.func @transform_0(%arg0: i32) -> (i32, i32, i32) {
    %c0_i32 = arith.constant 0 : i32
    %c0_i32_0 = arith.constant 0 : i32
    %c0_i32_1 = arith.constant 0 : i32
    return %arg0, %c0_i32, %c0_i32_0 : i32, i32, i32
  }
  func.func @transform_1(%arg0: i32) -> (i32, i32) {
    %c0_i32 = arith.constant 0 : i32
    %c0_i32_0 = arith.constant 0 : i32
    %c0_i32_1 = arith.constant 0 : i32
    return %c0_i32, %c0_i32_0 : i32, i32
  }
  func.func @transform_2(%arg0: i32) -> (i32, i32) {
    %c0_i32 = arith.constant 0 : i32
    %c0_i32_0 = arith.constant 0 : i32
    %c0_i32_1 = arith.constant 0 : i32
    return %c0_i32, %c0_i32_0 : i32, i32
  }
  func.func @transform_3(%arg0: i32) -> (i32, i32, i32) {
    %c0_i32 = arith.constant 0 : i32
    %c0_i32_0 = arith.constant 0 : i32
    %c0_i32_1 = arith.constant 0 : i32
    return %arg0, %c0_i32, %c0_i32_0 : i32, i32, i32
  }
}

</mosaic_0001>

<llo_original>
// kernel: tpu_custom_call.1
$region0: #{tpu_custom_call.1}
  #allocation0 [shape = 'u32[]', space=smem, size = 0x4, offset = 0x4, fixed_abs, tag = 'smem constant byte address 0x4 - core index']
  #allocation1 [shape = 'u32[144,128]{1,0:T(1,128)}', space=vmem, size = 0x12000, scoped, tag = 'internal scratch']
  %s0 = inlined_call_operand.hbm [shape: bf16[4,20,32], index: 0, kind: input, shape index: {}]
  %s1 = inlined_call_operand.hbm [shape: bf16[160,128], index: 1, kind: input, shape index: {}]
  %s2 = inlined_call_operand.hbm [shape: f32[1,128], index: 2, kind: input, shape index: {}]
  %s3 = inlined_call_operand.hbm [shape: f32[4,128,16], index: 3, kind: output, shape index: {}]
  %s4 = sld [smem:[#allocation0]]
  $region34: #{tpu_custom_call.1} parent=0
    _
  %s6 = ssub.s32 1, %s4
  %s7 = scalar_select 0, %s6, %s4
  $region1: #{tpu_custom_call.1} parent=0
    #allocation2 [shape = 'u8[24576]{0}', space=vmem, size = 0x6000, scoped, tag = 'input window, operand 0, single buffered']
    #allocation3 [shape = 's32[1]{0}', space=sflag, size = 0x4, scoped, tag = 'scoped memory for tpu_custom_call.1']
    #allocation4 [shape = 's32[1]{0}', space=sflag, size = 0x4, scoped, tag = 'scoped memory for tpu_custom_call.1']
    #allocation5 [shape = 'u8[40960]{0}', space=vmem, size = 0xa000, scoped, tag = 'input window, operand 1, single buffered']
    #allocation6 [shape = 's32[1]{0}', space=sflag, size = 0x4, scoped, tag = 'scoped memory for tpu_custom_call.1']
    #allocation7 [shape = 'u8[512]{0}', space=vmem, size = 0x400, scoped, tag = 'input window, operand 2, single buffered']
    #allocation8 [shape = 'u8[262144]{0}', space=vmem, size = 0x40000, scoped, tag = 'output window, operand 0, single buffered']
    %8 = vsyncpa [#allocation3], 0
    %9 = vsyncpa [#allocation6], 0
    %10 = vsyncpa [#allocation4], 0
    // Predicated region
    $region2: #{tpu_custom_call.1} parent=1 // pred_check
      _
    $region3: #{tpu_custom_call.1} parent=1 // pred_check_branch
      %12 = sbr.rel (0) target = $region5
    $region4: #{tpu_custom_call.1} parent=1 // pred_region
      %s14 = ssub.s32 768, 768
      %15 = vsyncadd [#allocation3], %s14
      %s16 = sshll.u32 [#allocation2], 4
      %s17 = int_to_ptr.vmem [resolvable:$true] %s16
      %22 = dma.hbm_to_vmem [thread:$0]  %s0, 768, %s17, [#allocation3], 64, 64, 4
    $region5: #{tpu_custom_call.1} parent=1 // pred_fallthru
      _
    // Predicated region
    $region6: #{tpu_custom_call.1} parent=1 // pred_check
      _
    $region7: #{tpu_custom_call.1} parent=1 // pred_check_branch
      %24 = sbr.rel (0) target = $region9
    $region8: #{tpu_custom_call.1} parent=1 // pred_region
      %s26 = ssub.s32 1280, 1280
      %27 = vsyncadd [#allocation6], %s26
      %s28 = sshll.u32 [#allocation5], 4
      %s29 = int_to_ptr.vmem [resolvable:$true] %s28
      %34 = dma.hbm_to_vmem [thread:$0]  %s1, 1280, %s29, [#allocation6], 64, 64, 4
    $region9: #{tpu_custom_call.1} parent=1 // pred_fallthru
      _
    // Predicated region
    $region10: #{tpu_custom_call.1} parent=1 // pred_check
      _
    $region11: #{tpu_custom_call.1} parent=1 // pred_check_branch
      %36 = sbr.rel (0) target = $region13
    $region12: #{tpu_custom_call.1} parent=1 // pred_region
      %s38 = ssub.s32 16, 16
      %39 = vsyncadd [#allocation6], %s38
      %s41 = sshll.u32 [#allocation7], 4
      %s42 = int_to_ptr.vmem [resolvable:$true] %s41
      %44 = dma.hbm_to_vmem [thread:$0]  %s2, 16, %s42, [#allocation6]
    $region13: #{tpu_custom_call.1} parent=1 // pred_fallthru
      _
    // Predicated region
    $region14: #{tpu_custom_call.1} parent=1 // pred_check
      _
    $region15: #{tpu_custom_call.1} parent=1 // pred_check_branch
      %46 = sbr.rel (0) target = $region17
    $region16: #{tpu_custom_call.1} parent=1 // pred_region
      %47 = dma.done [#allocation3], 768
    $region17: #{tpu_custom_call.1} parent=1 // pred_fallthru
      _
    // Predicated region
    $region18: #{tpu_custom_call.1} parent=1 // pred_check
      _
    $region19: #{tpu_custom_call.1} parent=1 // pred_check_branch
      %49 = sbr.rel (0) target = $region21
    $region20: #{tpu_custom_call.1} parent=1 // pred_region
      %50 = dma.done [#allocation6], 1280
    $region21: #{tpu_custom_call.1} parent=1 // pred_fallthru
      _
    // Predicated region
    $region22: #{tpu_custom_call.1} parent=1 // pred_check
      _
    $region23: #{tpu_custom_call.1} parent=1 // pred_check_branch
      %52 = sbr.rel (0) target = $region25
    $region24: #{tpu_custom_call.1} parent=1 // pred_region
      %53 = dma.done [#allocation6], 16
    $region25: #{tpu_custom_call.1} parent=1 // pred_fallthru
      _
    %v55 = vld [vmem:[#allocation2] sm:$0xf]
    %v56 = vld [vmem:[#allocation2 + $0x4] sm:$0xf]
    %v57 = vld [vmem:[#allocation2 + $0xc] sm:$0xf]
    %v58 = vld [vmem:[#allocation2 + $0x10] sm:$0xf]
    %v59 = vld [vmem:[#allocation2 + $0x18] sm:$0xf]
    %v60 = vld [vmem:[#allocation2 + $0x1c] sm:$0xf]
    %v61 = vld [vmem:[#allocation2 + $0x24] sm:$0xf]
    %v62 = vld [vmem:[#allocation2 + $0x28] sm:$0xf]
    %v63 = vld [vmem:[#allocation5] sm:$0xf]
    %v64 = vld [vmem:[#allocation5 + $0x4] sm:$0xf]
    %v65 = vld [vmem:[#allocation5 + $0x8] sm:$0xf]
    %v66 = vld [vmem:[#allocation5 + $0xc] sm:$0xf]
    %v67 = vld [vmem:[#allocation2 + $0x8] sm:$0x1]
    %v68 = vld [vmem:[#allocation2 + $0x14] sm:$0x1]
    %v69 = vld [vmem:[#allocation2 + $0x20] sm:$0x1]
    %v70 = vld [vmem:[#allocation2 + $0x2c] sm:$0x1]
    %vm71 = vsmask.f32 3328
    %vm72 = vsmask.f32 7440
    %vm73 = vmor %vm71, %vm72
    %v75 = vshrl.u32 %v55, 16
    %v77 = vrot.slane %v75, 4
    %v78 = vshll.u32 %v55, 16
    %v80 = vrot.slane %v78, 5
    %v81 = vor.u32 %v77, %v80
    %v82 = vrot.slane %v81, 4
    %v84 = vshll.u32 %v56, 16
    %v86 = vrot.slane %v84, 5
    %v87 = vsel %vm73, %v82, %v86
    %v88 = vshrl.u32 %v56, 16
    %v90 = vrot.slane %v88, 4
    %v91 = vor.u32 %v90, %v86
    %v92 = vrot.slane %v91, 4
    %v94 = vshll.u32 %v67, 16
    %v96 = vrot.slane %v94, 5
    %v97 = vsel %vm73, %v92, %v96
    %v99 = vshrl.u32 %v57, 16
    %v101 = vrot.slane %v99, 4
    %v102 = vshll.u32 %v57, 16
    %v104 = vrot.slane %v102, 5
    %v105 = vor.u32 %v101, %v104
    %v106 = vrot.slane %v105, 4
    %v108 = vshll.u32 %v58, 16
    %v110 = vrot.slane %v108, 5
    %v111 = vsel %vm73, %v106, %v110
    %v112 = vshrl.u32 %v58, 16
    %v114 = vrot.slane %v112, 4
    %v115 = vor.u32 %v114, %v110
    %v116 = vrot.slane %v115, 4
    %v118 = vshll.u32 %v68, 16
    %v120 = vrot.slane %v118, 5
    %v121 = vsel %vm73, %v116, %v120
    %v123 = vshrl.u32 %v59, 16
    %v125 = vrot.slane %v123, 4
    %v126 = vshll.u32 %v59, 16
    %v128 = vrot.slane %v126, 5
    %v129 = vor.u32 %v125, %v128
    %v130 = vrot.slane %v129, 4
    %v132 = vshll.u32 %v60, 16
    %v134 = vrot.slane %v132, 5
    %v135 = vsel %vm73, %v130, %v134
    %v136 = vshrl.u32 %v60, 16
    %v138 = vrot.slane %v136, 4
    %v139 = vor.u32 %v138, %v134
    %v140 = vrot.slane %v139, 4
    %v142 = vshll.u32 %v69, 16
    %v144 = vrot.slane %v142, 5
    %v145 = vsel %vm73, %v140, %v144
    %v147 = vshrl.u32 %v61, 16
    %v149 = vrot.slane %v147, 4
    %v150 = vshll.u32 %v61, 16
    %v152 = vrot.slane %v150, 5
    %v153 = vor.u32 %v149, %v152
    %v154 = vrot.slane %v153, 4
    %v156 = vshll.u32 %v62, 16
    %v158 = vrot.slane %v156, 5
    %v159 = vsel %vm73, %v154, %v158
    %v160 = vshrl.u32 %v62, 16
    %v162 = vrot.slane %v160, 4
    %v163 = vor.u32 %v162, %v158
    %v164 = vrot.slane %v163, 4
    %v166 = vshll.u32 %v70, 16
    %v168 = vrot.slane %v166, 5
    %v169 = vsel %vm73, %v164, %v168
    %v170 = vld [vmem:[#allocation5 + $0x10] sm:$0xf]
    %v171 = vld [vmem:[#allocation5 + $0x14] sm:$0xf]
    %v172 = vld [vmem:[#allocation5 + $0x18] sm:$0xf]
    %v173 = vld [vmem:[#allocation5 + $0x1c] sm:$0xf]
    %v174 = vunpack.c.l.b16 %v87
    %v175 = vunpack.c.l.b16 %v97
    %v176 = vunpack.c.l.b16 %v111
    %v177 = vunpack.c.l.b16 %v121
    %v178 = vunpack.c.l.b16 %v135
    %v179 = vunpack.c.l.b16 %v145
    %v180 = vunpack.c.l.b16 %v159
    %v181 = vunpack.c.l.b16 %v169
    %v182 = vpack.c.b16 %v175, %v174
    %v183 = vpack.c.b16 %v177, %v176
    %v184 = vpack.c.b16 %v179, %v178
    %v185 = vpack.c.b16 %v181, %v180
    %v190 = vunpack.c.l.b16 %v170
    %v191 = vunpack.c.l.b16 %v171
    %v192 = vunpack.c.l.b16 %v172
    %v193 = vunpack.c.l.b16 %v173
    %v194 = vpack.c.b16 %v191, %v190
    %v195 = vpack.c.b16 %v193, %v192
    %vm198 = vcmask 261120
    %v200 = vsel %vm198, %v182, 0
    %v203 = vsel %vm198, %v183, 0
    %v206 = vsel %vm198, %v184, 0
    %v209 = vsel %vm198, %v185, 0
    %211 = vmatprep.subr.bf16.mxu0 0
    %212 = vmatpush1.bf16.msra.mxu0 %v194
    %213 = vmatprep.subr.bf16.mxu0 0
    %214 = vmatpush1.bf16.msra.mxu0 %v195
    %215 = vmatprep.subr.bf16.mxu0 0
    %216 = vmatpush1.bf16.msra.mxu0 0
    %217 = vmatprep.subr.bf16.mxu0 0
    %218 = vmatpush1.bf16.msra.mxu0 0
    %219 = vmatprep.subr.bf16.mxu0 0
    %220 = vmatpush1.bf16.msra.mxu0 0
    %221 = vmatprep.subr.bf16.mxu0 0
    %222 = vmatpush1.bf16.msra.mxu0 0
    %223 = vmatprep.subr.bf16.mxu0 0
    %224 = vmatpush1.bf16.msra.mxu0 0
    %225 = vmatprep.subr.bf16.mxu0 0
    %226 = vmatpush1.bf16.msra.mxu0 0
    %227 = vmatprep.subr.bf16.mxu0 0
    %228 = vmatpush1.bf16.msra.mxu0 0
    %229 = vmatprep.subr.bf16.mxu0 0
    %230 = vmatpush1.bf16.msra.mxu0 0
    %231 = vmatprep.subr.bf16.mxu0 0
    %232 = vmatpush1.bf16.msra.mxu0 0
    %233 = vmatprep.subr.bf16.mxu0 0
    %234 = vmatpush1.bf16.msra.mxu0 0
    %235 = vmatprep.subr.bf16.mxu0 0
    %236 = vmatpush1.bf16.msra.mxu0 0
    %237 = vmatprep.subr.bf16.mxu0 0
    %238 = vmatpush1.bf16.msra.mxu0 0
    %239 = vmatprep.subr.bf16.mxu0 0
    %240 = vmatpush1.bf16.msra.mxu0 0
    %241 = vmatprep.subr.bf16.mxu0 0
    %242 = vmatpush1.bf16.msra.mxu0 0
    %243 = vmatprep.mubr.bf16.mxu0 0
    %244 = vmatmul.mubr.bf16.gmra.mrb[0].mxu0 %v200
    %v245 = vpop.f32.mrb[0].mxu0
    %v246 = vadd.f32 0.0, %v245
    %v247 = vpop.f32.mrb[0].mxu0
    %v248 = vpop.f32.mrb[0].mxu0
    %v249 = vadd.f32 0.0, %v248
    %v250 = vpop.f32.mrb[0].mxu0
    %251 = vmatprep.mubr.bf16.mxu0 0
    %252 = vmatmul.mubr.bf16.gmra.mrb[0].mxu0 %v203
    %v253 = vpop.f32.mrb[0].mxu0
    %v254 = vadd.f32 0.0, %v253
    %v255 = vpop.f32.mrb[0].mxu0
    %v256 = vpop.f32.mrb[0].mxu0
    %v257 = vadd.f32 0.0, %v256
    %v258 = vpop.f32.mrb[0].mxu0
    %259 = vmatprep.mubr.bf16.mxu0 0
    %260 = vmatmul.mubr.bf16.gmra.mrb[0].mxu0 %v206
    %v261 = vpop.f32.mrb[0].mxu0
    %v262 = vadd.f32 0.0, %v261
    %v263 = vpop.f32.mrb[0].mxu0
    %v264 = vpop.f32.mrb[0].mxu0
    %v265 = vadd.f32 0.0, %v264
    %v266 = vpop.f32.mrb[0].mxu0
    %267 = vmatprep.mubr.bf16.mxu0 0
    %268 = vmatmul.mubr.bf16.gmra.mrb[0].mxu0 %v209
    %v269 = vpop.f32.mrb[0].mxu0
    %v270 = vadd.f32 0.0, %v269
    %v271 = vpop.f32.mrb[0].mxu0
    %v272 = vpop.f32.mrb[0].mxu0
    %v273 = vadd.f32 0.0, %v272
    %v274 = vpop.f32.mrb[0].mxu0
    %275 = vdwg.mxu0
    %v284 = vunpack.c.l.b16 %v55
    %v285 = vunpack.c.l.b16 %v56
    %v286 = vunpack.c.l.b16 %v57
    %v287 = vunpack.c.l.b16 %v58
    %v288 = vunpack.c.l.b16 %v59
    %v289 = vunpack.c.l.b16 %v60
    %v290 = vunpack.c.l.b16 %v61
    %v291 = vunpack.c.l.b16 %v62
    %v292 = vpack.c.b16 %v285, %v284
    %v293 = vpack.c.b16 %v287, %v286
    %v294 = vpack.c.b16 %v289, %v288
    %v295 = vpack.c.b16 %v291, %v290
    %v300 = vunpack.c.l.b16 %v63
    %v301 = vunpack.c.l.b16 %v64
    %v302 = vunpack.c.l.b16 %v65
    %v303 = vunpack.c.l.b16 %v66
    %v304 = vpack.c.b16 %v301, %v300
    %v305 = vpack.c.b16 %v303, %v302
    %v309 = vsel %vm198, %v292, 0
    %v312 = vsel %vm198, %v293, 0
    %v315 = vsel %vm198, %v294, 0
    %v318 = vsel %vm198, %v295, 0
    %320 = vmatprep.subr.bf16.mxu0 0
    %321 = vmatpush1.bf16.msra.mxu0 %v304
    %322 = vmatprep.subr.bf16.mxu0 0
    %323 = vmatpush1.bf16.msra.mxu0 %v305
    %324 = vmatprep.subr.bf16.mxu0 0
    %325 = vmatpush1.bf16.msra.mxu0 0
    %326 = vmatprep.subr.bf16.mxu0 0
    %327 = vmatpush1.bf16.msra.mxu0 0
    %328 = vmatprep.subr.bf16.mxu0 0
    %329 = vmatpush1.bf16.msra.mxu0 0
    %330 = vmatprep.subr.bf16.mxu0 0
    %331 = vmatpush1.bf16.msra.mxu0 0
    %332 = vmatprep.subr.bf16.mxu0 0
    %333 = vmatpush1.bf16.msra.mxu0 0
    %334 = vmatprep.subr.bf16.mxu0 0
    %335 = vmatpush1.bf16.msra.mxu0 0
    %336 = vmatprep.subr.bf16.mxu0 0
    %337 = vmatpush1.bf16.msra.mxu0 0
    %338 = vmatprep.subr.bf16.mxu0 0
    %339 = vmatpush1.bf16.msra.mxu0 0
    %340 = vmatprep.subr.bf16.mxu0 0
    %341 = vmatpush1.bf16.msra.mxu0 0
    %342 = vmatprep.subr.bf16.mxu0 0
    %343 = vmatpush1.bf16.msra.mxu0 0
    %344 = vmatprep.subr.bf16.mxu0 0
    %345 = vmatpush1.bf16.msra.mxu0 0
    %346 = vmatprep.subr.bf16.mxu0 0
    %347 = vmatpush1.bf16.msra.mxu0 0
    %348 = vmatprep.subr.bf16.mxu0 0
    %349 = vmatpush1.bf16.msra.mxu0 0
    %350 = vmatprep.subr.bf16.mxu0 0
    %351 = vmatpush1.bf16.msra.mxu0 0
    %352 = vmatprep.mubr.bf16.mxu0 0
    %353 = vmatmul.mubr.bf16.gmra.mrb[0].mxu0 %v309
    %v354 = vpop.f32.mrb[0].mxu0
    %v355 = vadd.f32 %v246, %v354
    %v356 = vpop.f32.mrb[0].mxu0
    %v357 = vpop.f32.mrb[0].mxu0
    %v358 = vadd.f32 %v249, %v357
    %v359 = vpop.f32.mrb[0].mxu0
    %360 = vmatprep.mubr.bf16.mxu0 0
    %361 = vmatmul.mubr.bf16.gmra.mrb[0].mxu0 %v312
    %v362 = vpop.f32.mrb[0].mxu0
    %v363 = vadd.f32 %v254, %v362
    %v364 = vpop.f32.mrb[0].mxu0
    %v365 = vpop.f32.mrb[0].mxu0
    %v366 = vadd.f32 %v257, %v365
    %v367 = vpop.f32.mrb[0].mxu0
    %368 = vmatprep.mubr.bf16.mxu0 0
    %369 = vmatmul.mubr.bf16.gmra.mrb[0].mxu0 %v315
    %v370 = vpop.f32.mrb[0].mxu0
    %v371 = vadd.f32 %v262, %v370
    %v372 = vpop.f32.mrb[0].mxu0
    %v373 = vpop.f32.mrb[0].mxu0
    %v374 = vadd.f32 %v265, %v373
    %v375 = vpop.f32.mrb[0].mxu0
    %376 = vmatprep.mubr.bf16.mxu0 0
    %377 = vmatmul.mubr.bf16.gmra.mrb[0].mxu0 %v318
    %v378 = vpop.f32.mrb[0].mxu0
    %v379 = vadd.f32 %v270, %v378
    %v380 = vpop.f32.mrb[0].mxu0
    %v381 = vpop.f32.mrb[0].mxu0
    %v382 = vadd.f32 %v273, %v381
    %v383 = vpop.f32.mrb[0].mxu0
    %384 = vdwg.mxu0
    %v385 = vld [vmem:[#allocation2] sm:$0xe]
    %v386 = vld [vmem:[#allocation2 + $0xc] sm:$0xe]
    %v387 = vld [vmem:[#allocation2 + $0x18] sm:$0xe]
    %v388 = vld [vmem:[#allocation2 + $0x24] sm:$0xe]
    %vm397 = vcmask 1042432
    %vm398 = vcmask 1046532
    %vm399 = vmor %vm397, %vm398
    %v400 = vrot.slane %v385, 5
    %v401 = vrot.slane %v400, 4
    %v402 = vrot.slane %v56, 5
    %v403 = vsel %vm399, %v401, %v402
    %v404 = vrot.slane %v402, 4
    %v405 = vrot.slane %v67, 5
    %v406 = vsel %vm399, %v404, %v405
    %v407 = vrot.slane %v386, 5
    %v408 = vrot.slane %v407, 4
    %v409 = vrot.slane %v58, 5
    %v410 = vsel %vm399, %v408, %v409
    %v411 = vrot.slane %v409, 4
    %v412 = vrot.slane %v68, 5
    %v413 = vsel %vm399, %v411, %v412
    %v414 = vrot.slane %v387, 5
    %v415 = vrot.slane %v414, 4
    %v416 = vrot.slane %v60, 5
    %v417 = vsel %vm399, %v415, %v416
    %v418 = vrot.slane %v416, 4
    %v419 = vrot.slane %v69, 5
    %v420 = vsel %vm399, %v418, %v419
    %v421 = vrot.slane %v388, 5
    %v422 = vrot.slane %v421, 4
    %v423 = vrot.slane %v62, 5
    %v424 = vsel %vm399, %v422, %v423
    %v425 = vrot.slane %v423, 4
    %v426 = vrot.slane %v70, 5
    %v427 = vsel %vm399, %v425, %v426
    %v428 = vld [vmem:[#allocation5 + $0x20] sm:$0xf]
    %v429 = vld [vmem:[#allocation5 + $0x24] sm:$0xf]
    %v430 = vld [vmem:[#allocation5 + $0x28] sm:$0xf]
    %v431 = vld [vmem:[#allocation5 + $0x2c] sm:$0xf]
    %v432 = vunpack.c.l.b16 %v403
    %v433 = vunpack.c.l.b16 %v406
    %v434 = vunpack.c.l.b16 %v410
    %v435 = vunpack.c.l.b16 %v413
    %v436 = vunpack.c.l.b16 %v417
    %v437 = vunpack.c.l.b16 %v420
    %v438 = vunpack.c.l.b16 %v424
    %v439 = vunpack.c.l.b16 %v427
    %v440 = vpack.c.b16 %v433, %v432
    %v441 = vpack.c.b16 %v435, %v434
    %v442 = vpack.c.b16 %v437, %v436
    %v443 = vpack.c.b16 %v439, %v438
    %v448 = vunpack.c.l.b16 %v428
    %v449 = vunpack.c.l.b16 %v429
    %v450 = vunpack.c.l.b16 %v430
    %v451 = vunpack.c.l.b16 %v431
    %v452 = vpack.c.b16 %v449, %v448
    %v453 = vpack.c.b16 %v451, %v450
    %v457 = vsel %vm198, %v440, 0
    %v460 = vsel %vm198, %v441, 0
    %v463 = vsel %vm198, %v442, 0
    %v466 = vsel %vm198, %v443, 0
    %468 = vmatprep.subr.bf16.mxu0 0
    %469 = vmatpush1.bf16.msra.mxu0 %v452
    %470 = vmatprep.subr.bf16.mxu0 0
    %471 = vmatpush1.bf16.msra.mxu0 %v453
    %472 = vmatprep.subr.bf16.mxu0 0
    %473 = vmatpush1.bf16.msra.mxu0 0
    %474 = vmatprep.subr.bf16.mxu0 0
    %475 = vmatpush1.bf16.msra.mxu0 0
    %476 = vmatprep.subr.bf16.mxu0 0
    %477 = vmatpush1.bf16.msra.mxu0 0
    %478 = vmatprep.subr.bf16.mxu0 0
    %479 = vmatpush1.bf16.msra.mxu0 0
    %480 = vmatprep.subr.bf16.mxu0 0
    %481 = vmatpush1.bf16.msra.mxu0 0
    %482 = vmatprep.subr.bf16.mxu0 0
    %483 = vmatpush1.bf16.msra.mxu0 0
    %484 = vmatprep.subr.bf16.mxu0 0
    %485 = vmatpush1.bf16.msra.mxu0 0
    %486 = vmatprep.subr.bf16.mxu0 0
    %487 = vmatpush1.bf16.msra.mxu0 0
    %488 = vmatprep.subr.bf16.mxu0 0
    %489 = vmatpush1.bf16.msra.mxu0 0
    %490 = vmatprep.subr.bf16.mxu0 0
    %491 = vmatpush1.bf16.msra.mxu0 0
    %492 = vmatprep.subr.bf16.mxu0 0
    %493 = vmatpush1.bf16.msra.mxu0 0
    %494 = vmatprep.subr.bf16.mxu0 0
    %495 = vmatpush1.bf16.msra.mxu0 0
    %496 = vmatprep.subr.bf16.mxu0 0
    %497 = vmatpush1.bf16.msra.mxu0 0
    %498 = vmatprep.subr.bf16.mxu0 0
    %499 = vmatpush1.bf16.msra.mxu0 0
    %500 = vmatprep.mubr.bf16.mxu0 0
    %501 = vmatmul.mubr.bf16.gmra.mrb[0].mxu0 %v457
    %v502 = vpop.f32.mrb[0].mxu0
    %v503 = vadd.f32 0.0, %v502
    %v504 = vpop.f32.mrb[0].mxu0
    %v505 = vpop.f32.mrb[0].mxu0
    %v506 = vadd.f32 0.0, %v505
    %v507 = vpop.f32.mrb[0].mxu0
    %508 = vmatprep.mubr.bf16.mxu0 0
    %509 = vmatmul.mubr.bf16.gmra.mrb[0].mxu0 %v460
    %v510 = vpop.f32.mrb[0].mxu0
    %v511 = vadd.f32 0.0, %v510
    %v512 = vpop.f32.mrb[0].mxu0
    %v513 = vpop.f32.mrb[0].mxu0
    %v514 = vadd.f32 0.0, %v513
    %v515 = vpop.f32.mrb[0].mxu0
    %516 = vmatprep.mubr.bf16.mxu0 0
    %517 = vmatmul.mubr.bf16.gmra.mrb[0].mxu0 %v463
    %v518 = vpop.f32.mrb[0].mxu0
    %v519 = vadd.f32 0.0, %v518
    %v520 = vpop.f32.mrb[0].mxu0
    %v521 = vpop.f32.mrb[0].mxu0
    %v522 = vadd.f32 0.0, %v521
    %v523 = vpop.f32.mrb[0].mxu0
    %524 = vmatprep.mubr.bf16.mxu0 0
    %525 = vmatmul.mubr.bf16.gmra.mrb[0].mxu0 %v466
    %v526 = vpop.f32.mrb[0].mxu0
    %v527 = vadd.f32 0.0, %v526
    %v528 = vpop.f32.mrb[0].mxu0
    %v529 = vpop.f32.mrb[0].mxu0
    %v530 = vadd.f32 0.0, %v529
    %v531 = vpop.f32.mrb[0].mxu0
    %532 = vdwg.mxu0
    %v533 = vadd.f32 %v355, %v503
    %v534 = vadd.f32 %v358, %v506
    %v535 = vadd.f32 %v363, %v511
    %v536 = vadd.f32 %v366, %v514
    %v537 = vadd.f32 %v371, %v519
    %v538 = vadd.f32 %v374, %v522
    %v539 = vadd.f32 %v379, %v527
    %v540 = vadd.f32 %v382, %v530
    %v541 = vld [vmem:[#allocation2 + $0x8] sm:$0x3]
    %v542 = vld [vmem:[#allocation2 + $0x14] sm:$0x3]
    %v543 = vld [vmem:[#allocation2 + $0x20] sm:$0x3]
    %v544 = vld [vmem:[#allocation2 + $0x2c] sm:$0x3]
    %vm545 = vsmask.f32 2304
    %vm546 = vsmask.f32 6416
    %vm547 = vmor %vm545, %vm546
    %v549 = vshrl.u32 %v385, 16
    %v551 = vrot.slane %v549, 5
    %v552 = vshll.u32 %v385, 16
    %v554 = vrot.slane %v552, 6
    %v555 = vor.u32 %v551, %v554
    %v556 = vrot.slane %v555, 4
    %v557 = vrot.slane %v88, 5
    %v558 = vrot.slane %v84, 6
    %v559 = vor.u32 %v557, %v558
    %v560 = vsel %vm547, %v556, %v559
    %v561 = vrot.slane %v559, 4
    %v563 = vshrl.u32 %v541, 16
    %v565 = vrot.slane %v563, 5
    %v566 = vshll.u32 %v541, 16
    %v568 = vrot.slane %v566, 6
    %v569 = vor.u32 %v565, %v568
    %v570 = vsel %vm547, %v561, %v569
    %v572 = vshrl.u32 %v386, 16
    %v574 = vrot.slane %v572, 5
    %v575 = vshll.u32 %v386, 16
    %v577 = vrot.slane %v575, 6
    %v578 = vor.u32 %v574, %v577
    %v579 = vrot.slane %v578, 4
    %v580 = vrot.slane %v112, 5
    %v581 = vrot.slane %v108, 6
    %v582 = vor.u32 %v580, %v581
    %v583 = vsel %vm547, %v579, %v582
    %v584 = vrot.slane %v582, 4
    %v586 = vshrl.u32 %v542, 16
    %v588 = vrot.slane %v586, 5
    %v589 = vshll.u32 %v542, 16
    %v591 = vrot.slane %v589, 6
    %v592 = vor.u32 %v588, %v591
    %v593 = vsel %vm547, %v584, %v592
    %v595 = vshrl.u32 %v387, 16
    %v597 = vrot.slane %v595, 5
    %v598 = vshll.u32 %v387, 16
    %v600 = vrot.slane %v598, 6
    %v601 = vor.u32 %v597, %v600
    %v602 = vrot.slane %v601, 4
    %v603 = vrot.slane %v136, 5
    %v604 = vrot.slane %v132, 6
    %v605 = vor.u32 %v603, %v604
    %v606 = vsel %vm547, %v602, %v605
    %v607 = vrot.slane %v605, 4
    %v609 = vshrl.u32 %v543, 16
    %v611 = vrot.slane %v609, 5
    %v612 = vshll.u32 %v543, 16
    %v614 = vrot.slane %v612, 6
    %v615 = vor.u32 %v611, %v614
    %v616 = vsel %vm547, %v607, %v615
    %v618 = vshrl.u32 %v388, 16
    %v620 = vrot.slane %v618, 5
    %v621 = vshll.u32 %v388, 16
    %v623 = vrot.slane %v621, 6
    %v624 = vor.u32 %v620, %v623
    %v625 = vrot.slane %v624, 4
    %v626 = vrot.slane %v160, 5
    %v627 = vrot.slane %v156, 6
    %v628 = vor.u32 %v626, %v627
    %v629 = vsel %vm547, %v625, %v628
    %v630 = vrot.slane %v628, 4
    %v632 = vshrl.u32 %v544, 16
    %v634 = vrot.slane %v632, 5
    %v635 = vshll.u32 %v544, 16
    %v637 = vrot.slane %v635, 6
    %v638 = vor.u32 %v634, %v637
    %v639 = vsel %vm547, %v630, %v638
    %v640 = vld [vmem:[#allocation5 + $0x30] sm:$0xf]
    %v641 = vld [vmem:[#allocation5 + $0x34] sm:$0xf]
    %v642 = vld [vmem:[#allocation5 + $0x38] sm:$0xf]
    %v643 = vld [vmem:[#allocation5 + $0x3c] sm:$0xf]
    %v644 = vunpack.c.l.b16 %v560
    %v645 = vunpack.c.l.b16 %v570
    %v646 = vunpack.c.l.b16 %v583
    %v647 = vunpack.c.l.b16 %v593
    %v648 = vunpack.c.l.b16 %v606
    %v649 = vunpack.c.l.b16 %v616
    %v650 = vunpack.c.l.b16 %v629
    %v651 = vunpack.c.l.b16 %v639
    %v652 = vpack.c.b16 %v645, %v644
    %v653 = vpack.c.b16 %v647, %v646
    %v654 = vpack.c.b16 %v649, %v648
    %v655 = vpack.c.b16 %v651, %v650
    %v660 = vunpack.c.l.b16 %v640
    %v661 = vunpack.c.l.b16 %v641
    %v662 = vunpack.c.l.b16 %v642
    %v663 = vunpack.c.l.b16 %v643
    %v664 = vpack.c.b16 %v661, %v660
    %v665 = vpack.c.b16 %v663, %v662
    %v669 = vsel %vm198, %v652, 0
    %v672 = vsel %vm198, %v653, 0
    %v675 = vsel %vm198, %v654, 0
    %v678 = vsel %vm198, %v655, 0
    %680 = vmatprep.subr.bf16.mxu0 0
    %681 = vmatpush1.bf16.msra.mxu0 %v664
    %682 = vmatprep.subr.bf16.mxu0 0
    %683 = vmatpush1.bf16.msra.mxu0 %v665
    %684 = vmatprep.subr.bf16.mxu0 0
    %685 = vmatpush1.bf16.msra.mxu0 0
    %686 = vmatprep.subr.bf16.mxu0 0
    %687 = vmatpush1.bf16.msra.mxu0 0
    %688 = vmatprep.subr.bf16.mxu0 0
    %689 = vmatpush1.bf16.msra.mxu0 0
    %690 = vmatprep.subr.bf16.mxu0 0
    %691 = vmatpush1.bf16.msra.mxu0 0
    %692 = vmatprep.subr.bf16.mxu0 0
    %693 = vmatpush1.bf16.msra.mxu0 0
    %694 = vmatprep.subr.bf16.mxu0 0
    %695 = vmatpush1.bf16.msra.mxu0 0
    %696 = vmatprep.subr.bf16.mxu0 0
    %697 = vmatpush1.bf16.msra.mxu0 0
    %698 = vmatprep.subr.bf16.mxu0 0
    %699 = vmatpush1.bf16.msra.mxu0 0
    %700 = vmatprep.subr.bf16.mxu0 0
    %701 = vmatpush1.bf16.msra.mxu0 0
    %702 = vmatprep.subr.bf16.mxu0 0
    %703 = vmatpush1.bf16.msra.mxu0 0
    %704 = vmatprep.subr.bf16.mxu0 0
    %705 = vmatpush1.bf16.msra.mxu0 0
    %706 = vmatprep.subr.bf16.mxu0 0
    %707 = vmatpush1.bf16.msra.mxu0 0
    %708 = vmatprep.subr.bf16.mxu0 0
    %709 = vmatpush1.bf16.msra.mxu0 0
    %710 = vmatprep.subr.bf16.mxu0 0
    %711 = vmatpush1.bf16.msra.mxu0 0
    %712 = vmatprep.mubr.bf16.mxu0 0
    %713 = vmatmul.mubr.bf16.gmra.mrb[0].mxu0 %v669
    %v714 = vpop.f32.mrb[0].mxu0
    %v715 = vadd.f32 0.0, %v714
    %v716 = vpop.f32.mrb[0].mxu0
    %v717 = vpop.f32.mrb[0].mxu0
    %v718 = vadd.f32 0.0, %v717
    %v719 = vpop.f32.mrb[0].mxu0
    %720 = vmatprep.mubr.bf16.mxu0 0
    %721 = vmatmul.mubr.bf16.gmra.mrb[0].mxu0 %v672
    %v722 = vpop.f32.mrb[0].mxu0
    %v723 = vadd.f32 0.0, %v722
    %v724 = vpop.f32.mrb[0].mxu0
    %v725 = vpop.f32.mrb[0].mxu0
    %v726 = vadd.f32 0.0, %v725
    %v727 = vpop.f32.mrb[0].mxu0
    %728 = vmatprep.mubr.bf16.mxu0 0
    %729 = vmatmul.mubr.bf16.gmra.mrb[0].mxu0 %v675
    %v730 = vpop.f32.mrb[0].mxu0
    %v731 = vadd.f32 0.0, %v730
    %v732 = vpop.f32.mrb[0].mxu0
    %v733 = vpop.f32.mrb[0].mxu0
    %v734 = vadd.f32 0.0, %v733
    %v735 = vpop.f32.mrb[0].mxu0
    %736 = vmatprep.mubr.bf16.mxu0 0
    %737 = vmatmul.mubr.bf16.gmra.mrb[0].mxu0 %v678
    %v738 = vpop.f32.mrb[0].mxu0
    %v739 = vadd.f32 0.0, %v738
    %v740 = vpop.f32.mrb[0].mxu0
    %v741 = vpop.f32.mrb[0].mxu0
    %v742 = vadd.f32 0.0, %v741
    %v743 = vpop.f32.mrb[0].mxu0
    %744 = vdwg.mxu0
    %v745 = vadd.f32 %v533, %v715
    %v746 = vadd.f32 %v534, %v718
    %v747 = vadd.f32 %v535, %v723
    %v748 = vadd.f32 %v536, %v726
    %v749 = vadd.f32 %v537, %v731
    %v750 = vadd.f32 %v538, %v734
    %v751 = vadd.f32 %v539, %v739
    %v752 = vadd.f32 %v540, %v742
    %v753 = vld [vmem:[#allocation2] sm:$0xc]
    %v754 = vld [vmem:[#allocation2 + $0xc] sm:$0xc]
    %v755 = vld [vmem:[#allocation2 + $0x18] sm:$0xc]
    %v756 = vld [vmem:[#allocation2 + $0x24] sm:$0xc]
    %vm765 = vcmask 1041408
    %vm766 = vcmask 1045508
    %vm767 = vmor %vm765, %vm766
    %v768 = vrot.slane %v753, 6
    %v769 = vrot.slane %v768, 4
    %v770 = vrot.slane %v56, 6
    %v771 = vsel %vm767, %v769, %v770
    %v772 = vrot.slane %v770, 4
    %v773 = vrot.slane %v541, 6
    %v774 = vsel %vm767, %v772, %v773
    %v775 = vrot.slane %v754, 6
    %v776 = vrot.slane %v775, 4
    %v777 = vrot.slane %v58, 6
    %v778 = vsel %vm767, %v776, %v777
    %v779 = vrot.slane %v777, 4
    %v780 = vrot.slane %v542, 6
    %v781 = vsel %vm767, %v779, %v780
    %v782 = vrot.slane %v755, 6
    %v783 = vrot.slane %v782, 4
    %v784 = vrot.slane %v60, 6
    %v785 = vsel %vm767, %v783, %v784
    %v786 = vrot.slane %v784, 4
    %v787 = vrot.slane %v543, 6
    %v788 = vsel %vm767, %v786, %v787
    %v789 = vrot.slane %v756, 6
    %v790 = vrot.slane %v789, 4
    %v791 = vrot.slane %v62, 6
    %v792 = vsel %vm767, %v790, %v791
    %v793 = vrot.slane %v791, 4
    %v794 = vrot.slane %v544, 6
    %v795 = vsel %vm767, %v793, %v794
    %v796 = vld [vmem:[#allocation5 + $0x40] sm:$0xf]
    %v797 = vld [vmem:[#allocation5 + $0x44] sm:$0xf]
    %v798 = vld [vmem:[#allocation5 + $0x48] sm:$0xf]
    %v799 = vld [vmem:[#allocation5 + $0x4c] sm:$0xf]
    %v800 = vunpack.c.l.b16 %v771
    %v801 = vunpack.c.l.b16 %v774
    %v802 = vunpack.c.l.b16 %v778
    %v803 = vunpack.c.l.b16 %v781
    %v804 = vunpack.c.l.b16 %v785
    %v805 = vunpack.c.l.b16 %v788
    %v806 = vunpack.c.l.b16 %v792
    %v807 = vunpack.c.l.b16 %v795
    %v808 = vpack.c.b16 %v801, %v800
    %v809 = vpack.c.b16 %v803, %v802
    %v810 = vpack.c.b16 %v805, %v804
    %v811 = vpack.c.b16 %v807, %v806
    %v816 = vunpack.c.l.b16 %v796
    %v817 = vunpack.c.l.b16 %v797
    %v818 = vunpack.c.l.b16 %v798
    %v819 = vunpack.c.l.b16 %v799
    %v820 = vpack.c.b16 %v817, %v816
    %v821 = vpack.c.b16 %v819, %v818
    %v825 = vsel %vm198, %v808, 0
    %v828 = vsel %vm198, %v809, 0
    %v831 = vsel %vm198, %v810, 0
    %v834 = vsel %vm198, %v811, 0
    %836 = vmatprep.subr.bf16.mxu0 0
    %837 = vmatpush1.bf16.msra.mxu0 %v820
    %838 = vmatprep.subr.bf16.mxu0 0
    %839 = vmatpush1.bf16.msra.mxu0 %v821
    %840 = vmatprep.subr.bf16.mxu0 0
    %841 = vmatpush1.bf16.msra.mxu0 0
    %842 = vmatprep.subr.bf16.mxu0 0
    %843 = vmatpush1.bf16.msra.mxu0 0
    %844 = vmatprep.subr.bf16.mxu0 0
    %845 = vmatpush1.bf16.msra.mxu0 0
    %846 = vmatprep.subr.bf16.mxu0 0
    %847 = vmatpush1.bf16.msra.mxu0 0
    %848 = vmatprep.subr.bf16.mxu0 0
    %849 = vmatpush1.bf16.msra.mxu0 0
    %850 = vmatprep.subr.bf16.mxu0 0
    %851 = vmatpush1.bf16.msra.mxu0 0
    %852 = vmatprep.subr.bf16.mxu0 0
    %853 = vmatpush1.bf16.msra.mxu0 0
    %854 = vmatprep.subr.bf16.mxu0 0
    %855 = vmatpush1.bf16.msra.mxu0 0
    %856 = vmatprep.subr.bf16.mxu0 0
    %857 = vmatpush1.bf16.msra.mxu0 0
    %858 = vmatprep.subr.bf16.mxu0 0
    %859 = vmatpush1.bf16.msra.mxu0 0
    %860 = vmatprep.subr.bf16.mxu0 0
    %861 = vmatpush1.bf16.msra.mxu0 0
    %862 = vmatprep.subr.bf16.mxu0 0
    %863 = vmatpush1.bf16.msra.mxu0 0
    %864 = vmatprep.subr.bf16.mxu0 0
    %865 = vmatpush1.bf16.msra.mxu0 0
    %866 = vmatprep.subr.bf16.mxu0 0
    %867 = vmatpush1.bf16.msra.mxu0 0
    %868 = vmatprep.mubr.bf16.mxu0 0
    %869 = vmatmul.mubr.bf16.gmra.mrb[0].mxu0 %v825
    %v870 = vpop.f32.mrb[0].mxu0
    %v871 = vadd.f32 0.0, %v870
    %v872 = vpop.f32.mrb[0].mxu0
    %v873 = vpop.f32.mrb[0].mxu0
    %v874 = vadd.f32 0.0, %v873
    %v875 = vpop.f32.mrb[0].mxu0
    %876 = vmatprep.mubr.bf16.mxu0 0
    %877 = vmatmul.mubr.bf16.gmra.mrb[0].mxu0 %v828
    %v878 = vpop.f32.mrb[0].mxu0
    %v879 = vadd.f32 0.0, %v878
    %v880 = vpop.f32.mrb[0].mxu0
    %v881 = vpop.f32.mrb[0].mxu0
    %v882 = vadd.f32 0.0, %v881
    %v883 = vpop.f32.mrb[0].mxu0
    %884 = vmatprep.mubr.bf16.mxu0 0
    %885 = vmatmul.mubr.bf16.gmra.mrb[0].mxu0 %v831
    %v886 = vpop.f32.mrb[0].mxu0
    %v887 = vadd.f32 0.0, %v886
    %v888 = vpop.f32.mrb[0].mxu0
    %v889 = vpop.f32.mrb[0].mxu0
    %v890 = vadd.f32 0.0, %v889
    %v891 = vpop.f32.mrb[0].mxu0
    %892 = vmatprep.mubr.bf16.mxu0 0
    %893 = vmatmul.mubr.bf16.gmra.mrb[0].mxu0 %v834
    %v894 = vpop.f32.mrb[0].mxu0
    %v895 = vadd.f32 0.0, %v894
    %v896 = vpop.f32.mrb[0].mxu0
    %v897 = vpop.f32.mrb[0].mxu0
    %v898 = vadd.f32 0.0, %v897
    %v899 = vpop.f32.mrb[0].mxu0
    %900 = vdwg.mxu0
    %v901 = vadd.f32 %v745, %v871
    %v902 = vadd.f32 %v746, %v874
    %v903 = vadd.f32 %v747, %v879
    %v904 = vadd.f32 %v748, %v882
    %v905 = vadd.f32 %v749, %v887
    %v906 = vadd.f32 %v750, %v890
    %v907 = vadd.f32 %v751, %v895
    %v908 = vadd.f32 %v752, %v898
    %v909 = vld [vmem:[#allocation7] sm:$0x1]
    %v911 = vlaneseq
    %v912 = vshrl.u32 %v911, 7
    %v913 = vsub.s32 0, %v912
    %v914 = vrot.slane %v909, %v913
    %v916 = vadd.f32 %v901, %v914
    %v917 = vadd.f32 %v902, %v914
    %v918 = vadd.f32 %v903, %v914
    %v919 = vadd.f32 %v904, %v914
    %v920 = vadd.f32 %v905, %v914
    %v921 = vadd.f32 %v906, %v914
    %v922 = vadd.f32 %v907, %v914
    %v923 = vadd.f32 %v908, %v914
    %924 = vxpose.xlu0.b32.start [1/16] %v916, 128
    %925 = vxpose.xlu0.b32.cont [2/16] %v917, 128
    %926 = vxpose.xlu0.b32.cont [3/16] 0.0, 128
    %927 = vxpose.xlu0.b32.cont [4/16] 0.0, 128
    %928 = vxpose.xlu0.b32.cont [5/16] 0.0, 128
    %929 = vxpose.xlu0.b32.cont [6/16] 0.0, 128
    %930 = vxpose.xlu0.b32.cont [7/16] 0.0, 128
    %931 = vxpose.xlu0.b32.cont [8/16] 0.0, 128
    %932 = vxpose.xlu0.b32.cont [9/16] 0.0, 128
    %933 = vxpose.xlu0.b32.cont [10/16] 0.0, 128
    %934 = vxpose.xlu0.b32.cont [11/16] 0.0, 128
    %935 = vxpose.xlu0.b32.cont [12/16] 0.0, 128
    %936 = vxpose.xlu0.b32.cont [13/16] 0.0, 128
    %937 = vxpose.xlu0.b32.cont [14/16] 0.0, 128
    %938 = vxpose.xlu0.b32.cont [15/16] 0.0, 128
    %939 = vxpose.xlu0.b32.end [16/16] 0.0, 128
    %v940 = vpop.trf.xlu0
    %v941 = vpop.trf.xlu0
    %v942 = vpop.trf.xlu0
    %v943 = vpop.trf.xlu0
    %v944 = vpop.trf.xlu0
    %v945 = vpop.trf.xlu0
    %v946 = vpop.trf.xlu0
    %v947 = vpop.trf.xlu0
    %v948 = vpop.trf.xlu0
    %v949 = vpop.trf.xlu0
    %v950 = vpop.trf.xlu0
    %v951 = vpop.trf.xlu0
    %v952 = vpop.trf.xlu0
    %v953 = vpop.trf.xlu0
    %v954 = vpop.trf.xlu0
    %v955 = vpop.trf.xlu0
    %956 = vxpose.xlu0.b32.start [1/16] %v918, 128
    %957 = vxpose.xlu0.b32.cont [2/16] %v919, 128
    %958 = vxpose.xlu0.b32.cont [3/16] 0.0, 128
    %959 = vxpose.xlu0.b32.cont [4/16] 0.0, 128
    %960 = vxpose.xlu0.b32.cont [5/16] 0.0, 128
    %961 = vxpose.xlu0.b32.cont [6/16] 0.0, 128
    %962 = vxpose.xlu0.b32.cont [7/16] 0.0, 128
    %963 = vxpose.xlu0.b32.cont [8/16] 0.0, 128
    %964 = vxpose.xlu0.b32.cont [9/16] 0.0, 128
    %965 = vxpose.xlu0.b32.cont [10/16] 0.0, 128
    %966 = vxpose.xlu0.b32.cont [11/16] 0.0, 128
    %967 = vxpose.xlu0.b32.cont [12/16] 0.0, 128
    %968 = vxpose.xlu0.b32.cont [13/16] 0.0, 128
    %969 = vxpose.xlu0.b32.cont [14/16] 0.0, 128
    %970 = vxpose.xlu0.b32.cont [15/16] 0.0, 128
    %971 = vxpose.xlu0.b32.end [16/16] 0.0, 128
    %v972 = vpop.trf.xlu0
    %v973 = vpop.trf.xlu0
    %v974 = vpop.trf.xlu0
    %v975 = vpop.trf.xlu0
    %v976 = vpop.trf.xlu0
    %v977 = vpop.trf.xlu0
    %v978 = vpop.trf.xlu0
    %v979 = vpop.trf.xlu0
    %v980 = vpop.trf.xlu0
    %v981 = vpop.trf.xlu0
    %v982 = vpop.trf.xlu0
    %v983 = vpop.trf.xlu0
    %v984 = vpop.trf.xlu0
    %v985 = vpop.trf.xlu0
    %v986 = vpop.trf.xlu0
    %v987 = vpop.trf.xlu0
    %988 = vxpose.xlu0.b32.start [1/16] %v920, 128
    %989 = vxpose.xlu0.b32.cont [2/16] %v921, 128
    %990 = vxpose.xlu0.b32.cont [3/16] 0.0, 128
    %991 = vxpose.xlu0.b32.cont [4/16] 0.0, 128
    %992 = vxpose.xlu0.b32.cont [5/16] 0.0, 128
    %993 = vxpose.xlu0.b32.cont [6/16] 0.0, 128
    %994 = vxpose.xlu0.b32.cont [7/16] 0.0, 128
    %995 = vxpose.xlu0.b32.cont [8/16] 0.0, 128
    %996 = vxpose.xlu0.b32.cont [9/16] 0.0, 128
    %997 = vxpose.xlu0.b32.cont [10/16] 0.0, 128
    %998 = vxpose.xlu0.b32.cont [11/16] 0.0, 128
    %999 = vxpose.xlu0.b32.cont [12/16] 0.0, 128
    %1000 = vxpose.xlu0.b32.cont [13/16] 0.0, 128
    %1001 = vxpose.xlu0.b32.cont [14/16] 0.0, 128
    %1002 = vxpose.xlu0.b32.cont [15/16] 0.0, 128
    %1003 = vxpose.xlu0.b32.end [16/16] 0.0, 128
    %v1004 = vpop.trf.xlu0
    %v1005 = vpop.trf.xlu0
    %v1006 = vpop.trf.xlu0
    %v1007 = vpop.trf.xlu0
    %v1008 = vpop.trf.xlu0
    %v1009 = vpop.trf.xlu0
    %v1010 = vpop.trf.xlu0
    %v1011 = vpop.trf.xlu0
    %v1012 = vpop.trf.xlu0
    %v1013 = vpop.trf.xlu0
    %v1014 = vpop.trf.xlu0
    %v1015 = vpop.trf.xlu0
    %v1016 = vpop.trf.xlu0
    %v1017 = vpop.trf.xlu0
    %v1018 = vpop.trf.xlu0
    %v1019 = vpop.trf.xlu0
    %1020 = vxpose.xlu0.b32.start [1/16] %v922, 128
    %1021 = vxpose.xlu0.b32.cont [2/16] %v923, 128
    %1022 = vxpose.xlu0.b32.cont [3/16] 0.0, 128
    %1023 = vxpose.xlu0.b32.cont [4/16] 0.0, 128
    %1024 = vxpose.xlu0.b32.cont [5/16] 0.0, 128
    %1025 = vxpose.xlu0.b32.cont [6/16] 0.0, 128
    %1026 = vxpose.xlu0.b32.cont [7/16] 0.0, 128
    %1027 = vxpose.xlu0.b32.cont [8/16] 0.0, 128
    %1028 = vxpose.xlu0.b32.cont [9/16] 0.0, 128
    %1029 = vxpose.xlu0.b32.cont [10/16] 0.0, 128
    %1030 = vxpose.xlu0.b32.cont [11/16] 0.0, 128
    %1031 = vxpose.xlu0.b32.cont [12/16] 0.0, 128
    %1032 = vxpose.xlu0.b32.cont [13/16] 0.0, 128
    %1033 = vxpose.xlu0.b32.cont [14/16] 0.0, 128
    %1034 = vxpose.xlu0.b32.cont [15/16] 0.0, 128
    %1035 = vxpose.xlu0.b32.end [16/16] 0.0, 128
    %v1036 = vpop.trf.xlu0
    %v1037 = vpop.trf.xlu0
    %v1038 = vpop.trf.xlu0
    %v1039 = vpop.trf.xlu0
    %v1040 = vpop.trf.xlu0
    %v1041 = vpop.trf.xlu0
    %v1042 = vpop.trf.xlu0
    %v1043 = vpop.trf.xlu0
    %v1044 = vpop.trf.xlu0
    %v1045 = vpop.trf.xlu0
    %v1046 = vpop.trf.xlu0
    %v1047 = vpop.trf.xlu0
    %v1048 = vpop.trf.xlu0
    %v1049 = vpop.trf.xlu0
    %v1050 = vpop.trf.xlu0
    %v1051 = vpop.trf.xlu0
    %vm1052 = vcmask 130048
    %1053 = vst.msk [vmem:[#allocation8] sm:$0xff] %vm1052, %v940
    %1054 = vst.msk [vmem:[#allocation8 + $0x8] sm:$0xff] %vm1052, %v941
    %1055 = vst.msk [vmem:[#allocation8 + $0x10] sm:$0xff] %vm1052, %v942
    %1056 = vst.msk [vmem:[#allocation8 + $0x18] sm:$0xff] %vm1052, %v943
    %1057 = vst.msk [vmem:[#allocation8 + $0x20] sm:$0xff] %vm1052, %v944
    %1058 = vst.msk [vmem:[#allocation8 + $0x28] sm:$0xff] %vm1052, %v945
    %1059 = vst.msk [vmem:[#allocation8 + $0x30] sm:$0xff] %vm1052, %v946
    %1060 = vst.msk [vmem:[#allocation8 + $0x38] sm:$0xff] %vm1052, %v947
    %1061 = vst.msk [vmem:[#allocation8 + $0x40] sm:$0xff] %vm1052, %v948
    %1062 = vst.msk [vmem:[#allocation8 + $0x48] sm:$0xff] %vm1052, %v949
    %1063 = vst.msk [vmem:[#allocation8 + $0x50] sm:$0xff] %vm1052, %v950
    %1064 = vst.msk [vmem:[#allocation8 + $0x58] sm:$0xff] %vm1052, %v951
    %1065 = vst.msk [vmem:[#allocation8 + $0x60] sm:$0xff] %vm1052, %v952
    %1066 = vst.msk [vmem:[#allocation8 + $0x68] sm:$0xff] %vm1052, %v953
    %1067 = vst.msk [vmem:[#allocation8 + $0x70] sm:$0xff] %vm1052, %v954
    %1068 = vst.msk [vmem:[#allocation8 + $0x78] sm:$0xff] %vm1052, %v955
    %1069 = vst.msk [vmem:[#allocation8 + $0x80] sm:$0xff] %vm1052, %v972
    %1070 = vst.msk [vmem:[#allocation8 + $0x88] sm:$0xff] %vm1052, %v973
    %1071 = vst.msk [vmem:[#allocation8 + $0x90] sm:$0xff] %vm1052, %v974
    %1072 = vst.msk [vmem:[#allocation8 + $0x98] sm:$0xff] %vm1052, %v975
    %1073 = vst.msk [vmem:[#allocation8 + $0xa0] sm:$0xff] %vm1052, %v976
    %1074 = vst.msk [vmem:[#allocation8 + $0xa8] sm:$0xff] %vm1052, %v977
    %1075 = vst.msk [vmem:[#allocation8 + $0xb0] sm:$0xff] %vm1052, %v978
    %1076 = vst.msk [vmem:[#allocation8 + $0xb8] sm:$0xff] %vm1052, %v979
    %1077 = vst.msk [vmem:[#allocation8 + $0xc0] sm:$0xff] %vm1052, %v980
    %1078 = vst.msk [vmem:[#allocation8 + $0xc8] sm:$0xff] %vm1052, %v981
    %1079 = vst.msk [vmem:[#allocation8 + $0xd0] sm:$0xff] %vm1052, %v982
    %1080 = vst.msk [vmem:[#allocation8 + $0xd8] sm:$0xff] %vm1052, %v983
    %1081 = vst.msk [vmem:[#allocation8 + $0xe0] sm:$0xff] %vm1052, %v984
    %1082 = vst.msk [vmem:[#allocation8 + $0xe8] sm:$0xff] %vm1052, %v985
    %1083 = vst.msk [vmem:[#allocation8 + $0xf0] sm:$0xff] %vm1052, %v986
    %1084 = vst.msk [vmem:[#allocation8 + $0xf8] sm:$0xff] %vm1052, %v987
    %1085 = vst.msk [vmem:[#allocation8 + $0x100] sm:$0xff] %vm1052, %v1004
    %1086 = vst.msk [vmem:[#allocation8 + $0x108] sm:$0xff] %vm1052, %v1005
    %1087 = vst.msk [vmem:[#allocation8 + $0x110] sm:$0xff] %vm1052, %v1006
    %1088 = vst.msk [vmem:[#allocation8 + $0x118] sm:$0xff] %vm1052, %v1007
    %1089 = vst.msk [vmem:[#allocation8 + $0x120] sm:$0xff] %vm1052, %v1008
    %1090 = vst.msk [vmem:[#allocation8 + $0x128] sm:$0xff] %vm1052, %v1009
    %1091 = vst.msk [vmem:[#allocation8 + $0x130] sm:$0xff] %vm1052, %v1010
    %1092 = vst.msk [vmem:[#allocation8 + $0x138] sm:$0xff] %vm1052, %v1011
    %1093 = vst.msk [vmem:[#allocation8 + $0x140] sm:$0xff] %vm1052, %v1012
    %1094 = vst.msk [vmem:[#allocation8 + $0x148] sm:$0xff] %vm1052, %v1013
    %1095 = vst.msk [vmem:[#allocation8 + $0x150] sm:$0xff] %vm1052, %v1014
    %1096 = vst.msk [vmem:[#allocation8 + $0x158] sm:$0xff] %vm1052, %v1015
    %1097 = vst.msk [vmem:[#allocation8 + $0x160] sm:$0xff] %vm1052, %v1016
    %1098 = vst.msk [vmem:[#allocation8 + $0x168] sm:$0xff] %vm1052, %v1017
    %1099 = vst.msk [vmem:[#allocation8 + $0x170] sm:$0xff] %vm1052, %v1018
    %1100 = vst.msk [vmem:[#allocation8 + $0x178] sm:$0xff] %vm1052, %v1019
    %1101 = vst.msk [vmem:[#allocation8 + $0x180] sm:$0xff] %vm1052, %v1036
    %1102 = vst.msk [vmem:[#allocation8 + $0x188] sm:$0xff] %vm1052, %v1037
    %1103 = vst.msk [vmem:[#allocation8 + $0x190] sm:$0xff] %vm1052, %v1038
    %1104 = vst.msk [vmem:[#allocation8 + $0x198] sm:$0xff] %vm1052, %v1039
    %1105 = vst.msk [vmem:[#allocation8 + $0x1a0] sm:$0xff] %vm1052, %v1040
    %1106 = vst.msk [vmem:[#allocation8 + $0x1a8] sm:$0xff] %vm1052, %v1041
    %1107 = vst.msk [vmem:[#allocation8 + $0x1b0] sm:$0xff] %vm1052, %v1042
    %1108 = vst.msk [vmem:[#allocation8 + $0x1b8] sm:$0xff] %vm1052, %v1043
    %1109 = vst.msk [vmem:[#allocation8 + $0x1c0] sm:$0xff] %vm1052, %v1044
    %1110 = vst.msk [vmem:[#allocation8 + $0x1c8] sm:$0xff] %vm1052, %v1045
    %1111 = vst.msk [vmem:[#allocation8 + $0x1d0] sm:$0xff] %vm1052, %v1046
    %1112 = vst.msk [vmem:[#allocation8 + $0x1d8] sm:$0xff] %vm1052, %v1047
    %1113 = vst.msk [vmem:[#allocation8 + $0x1e0] sm:$0xff] %vm1052, %v1048
    %1114 = vst.msk [vmem:[#allocation8 + $0x1e8] sm:$0xff] %vm1052, %v1049
    %1115 = vst.msk [vmem:[#allocation8 + $0x1f0] sm:$0xff] %vm1052, %v1050
    %1116 = vst.msk [vmem:[#allocation8 + $0x1f8] sm:$0xff] %vm1052, %v1051
    // Predicated region
    $region26: #{tpu_custom_call.1} parent=1 // pred_check
      _
    $region27: #{tpu_custom_call.1} parent=1 // pred_check_branch
      %1118 = sbr.rel (0) target = $region29
    $region28: #{tpu_custom_call.1} parent=1 // pred_region
      %s1120 = ssub.s32 8192, 8192
      %1121 = vsyncadd [#allocation4], %s1120
      %s1122 = sshll.u32 [#allocation8], 4
      %s1123 = int_to_ptr.vmem [resolvable:$true] %s1122
      %1128 = dma.vmem_to_hbm [thread:$0]  %s1123, 8192, %s3, [#allocation4], 128, 128, 8
    $region29: #{tpu_custom_call.1} parent=1 // pred_fallthru
      _
    // Predicated region
    $region30: #{tpu_custom_call.1} parent=1 // pred_check
      _
    $region31: #{tpu_custom_call.1} parent=1 // pred_check_branch
      %1130 = sbr.rel (0) target = $region33
    $region32: #{tpu_custom_call.1} parent=1 // pred_region
      %1131 = dma.done [#allocation4], 8192
    $region33: #{tpu_custom_call.1} parent=1 // pred_fallthru
      _
    %1132 = vsyncpa [#allocation3], 1
    %1133 = vsyncpa [#allocation6], 1
    %1134 = vsyncpa [#allocation4], 1

</llo_original>
